<compile_context>
chip_gen: v7x
topology: tpu7x:2x2x1
jax: 0.10.0
libtpu: 0.0.40
codegen_flags: <defaults>
</compile_context>

<pallas_src>
import numpy as np
import jax
import jax.numpy as jnp
from jax import lax
from jax.experimental import pallas as pl
from jax.experimental.pallas import tpu as pltpu

_LANES = 128
_DEFAULT_BLOCK_ROWS = 4096  # (4096, 128) f32 = 2 MiB per pipeline buffer


def _pair_values(x, is_real_lane):
    """For interleaved lanes [r0,i0,r1,i1,...] return (real, imag) of each
    pair, broadcast to both lanes of that pair (intra-vreg XLU lane rotates)."""
    n = x.shape[-1]
    left = pltpu.roll(x, 1, 1)        # left[i]  = x[i-1]
    right = pltpu.roll(x, n - 1, 1)   # right[i] = x[i+1]  (shift of -1 mod n)
    real_v = jnp.where(is_real_lane, x, left)
    imag_v = jnp.where(is_real_lane, right, x)
    return real_v, imag_v


def _zrelu_kernel(x_ref, o_ref):
    x = x_ref[...]
    lane = lax.broadcasted_iota(jnp.int32, x.shape, x.ndim - 1)
    is_real_lane = (lane & 1) == 0
    real_v, imag_v = _pair_values(x, is_real_lane)
    # phase = atan2(imag, real) in [0, pi/2]  <=>  first quadrant: r>=0 & i>=0
    # (differs from atan2 only at signed-zero corner cases)
    keep = jnp.logical_and(real_v >= 0.0, imag_v >= 0.0)
    o_ref[...] = jnp.where(keep, x, jnp.zeros_like(x))


def _zrelu_kernel_polar(x_ref, o_ref):
    x = x_ref[...]
    lane = lax.broadcasted_iota(jnp.int32, x.shape, x.ndim - 1)
    is_real_lane = (lane & 1) == 0
    # polar=True: the second (odd-lane) channel already holds the phase
    _, phase = _pair_values(x, is_real_lane)
    keep = jnp.logical_and(phase >= 0.0, phase <= np.pi / 2)
    o_ref[...] = jnp.where(keep, x, jnp.zeros_like(x))


def zrelu(x, polar=False, block_rows=_DEFAULT_BLOCK_ROWS):
    """Pallas TPU implementation of ZReLU.forward (no learnable params)."""
    assert x.shape[-1] == 2, "last axis must be the (real, imag) complex axis"
    orig_shape = x.shape
    dtype = x.dtype
    total = int(np.prod(orig_shape))  # flat element count (always even)

    flat = x.reshape(-1)              # contiguous reshape: no HBM pass
    padded = ((total + _LANES - 1) // _LANES) * _LANES
    if padded != total:               # pad only when not lane-aligned
        flat = jnp.pad(flat, (0, padded - total))
    rows = padded // _LANES
    x2d = flat.reshape(rows, _LANES)

    # Biggest block that fits comfortably in VMEM; full-extent block for small
    # inputs (allowed even when rows % 8 != 0), multiple-of-8 block otherwise.
    br = rows if rows <= block_rows else block_rows
    grid = pl.cdiv(rows, br)

    kern = _zrelu_kernel_polar if polar else _zrelu_kernel
    spec = pl.BlockSpec((br, _LANES), lambda i: (i, 0))
    out2d = pl.pallas_call(
        kern,
        out_shape=jax.ShapeDtypeStruct((rows, _LANES), dtype),
        grid_spec=pltpu.PrefetchScalarGridSpec(
            num_scalar_prefetch=0,
            grid=(grid,),
            in_specs=[spec],
            out_specs=spec,
        ),
        compiler_params=pltpu.CompilerParams(
            dimension_semantics=("parallel",),   # lets v7x shard across 2 TCs
            vmem_limit_bytes=32 * 1024 * 1024,
        ),
    )(x2d)

    out = out2d.reshape(-1)
    if padded != total:
        out = out[:total]
    return out.reshape(orig_shape)


def _zrelu_ref(x, polar=False):
    """Plain-JAX reference mirroring the PyTorch forward (atan2 path kept)."""
    real = x[..., 0]
    imag = x[..., 1]
    phase = imag if polar else jnp.arctan2(imag, real)
    phase = jnp.stack([phase, phase], axis=-1)
    out = jnp.where(phase >= 0.0, x, 0.0)
    out = jnp.where(phase <= np.pi / 2, out, 0.0)
    return out


if __name__ == "__main__":
    key = jax.random.PRNGKey(0)
    # (N, C, H, W, 2): conv-style features with a trailing complex axis
    x = jax.random.normal(key, (2, 4, 16, 16, 2), dtype=jnp.float32)

    out = jax.block_until_ready(zrelu(x, polar=False))
    ref = _zrelu_ref(x, polar=False)
    np.testing.assert_allclose(np.asarray(out), np.asarray(ref), atol=1e-6, rtol=1e-6)

    out_p = jax.block_until_ready(zrelu(x, polar=True))
    ref_p = _zrelu_ref(x, polar=True)
    np.testing.assert_allclose(np.asarray(out_p), np.asarray(ref_p), atol=1e-6, rtol=1e-6)

    print("KERNEL_OK")
</pallas_src>

<mosaic_0001>
module attributes {stable_mosaic.version = 11 : i64} {
  func.func @_zrelu_kernel(%arg0: i32, %arg1: memref<32x128xf32, #tpu.memory_space<vmem>>, %arg2: memref<32x128xf32, #tpu.memory_space<vmem>>) attributes {dimension_semantics = [#tpu.dimension_semantics<parallel>], iteration_bounds = array<i64: 1>, scalar_prefetch = 0 : i64, scratch_operands = 0 : i64, tpu.core_type = #tpu.core_type<tc>, window_params = [{transform_indices = @transform_0, window_bounds = array<i64: 32, 128>}, {transform_indices = @transform_1, window_bounds = array<i64: 32, 128>}]} {
    %c0 = arith.constant 0 : index
    %c0_0 = arith.constant 0 : index
    %0 = vector.load %arg1[%c0, %c0_0] : memref<32x128xf32, #tpu.memory_space<vmem>>, vector<32x128xf32>
    %1 = tpu.iota {dimensions = array<i32: 1>} : vector<32x128xi32>
    %c1_i32 = arith.constant 1 : i32
    %2 = vector.broadcast %c1_i32 : i32 to vector<32x128xi32>
    %3 = arith.andi %1, %2 : vector<32x128xi32>
    %c0_i32 = arith.constant 0 : i32
    %4 = vector.broadcast %c0_i32 : i32 to vector<32x128xi32>
    %5 = arith.cmpi eq, %3, %4 : vector<32x128xi32>
    %c1_i32_1 = arith.constant 1 : i32
    %6 = tpu.dynamic_rotate %0 by %c1_i32_1 dim 1 : vector<32x128xf32>, i32 -> vector<32x128xf32>
    %c127_i32 = arith.constant 127 : i32
    %7 = tpu.dynamic_rotate %0 by %c127_i32 dim 1 : vector<32x128xf32>, i32 -> vector<32x128xf32>
    %8 = arith.select %5, %0, %6 : vector<32x128xi1>, vector<32x128xf32>
    %9 = arith.select %5, %7, %0 : vector<32x128xi1>, vector<32x128xf32>
    %cst = arith.constant 0.000000e+00 : f32
    %10 = vector.broadcast %cst : f32 to vector<32x128xf32>
    %11 = arith.cmpf oge, %8, %10 : vector<32x128xf32>
    %cst_2 = arith.constant 0.000000e+00 : f32
    %12 = vector.broadcast %cst_2 : f32 to vector<32x128xf32>
    %13 = arith.cmpf oge, %9, %12 : vector<32x128xf32>
    %14 = arith.andi %11, %13 : vector<32x128xi1>
    %cst_3 = arith.constant 0.000000e+00 : f32
    %15 = vector.broadcast %cst_3 : f32 to vector<32x128xf32>
    %16 = arith.select %14, %0, %15 : vector<32x128xi1>, vector<32x128xf32>
    %c0_4 = arith.constant 0 : index
    %c0_5 = arith.constant 0 : index
    %17 = vector.load %arg2[%c0_4, %c0_5] : memref<32x128xf32, #tpu.memory_space<vmem>>, vector<32x128xf32>
    tpu.vector_store %arg2[%c0_4, %c0_5], %16 {strides = array<i32>} : memref<32x128xf32, #tpu.memory_space<vmem>>, vector<32x128xf32>,
    return
  }
  func.func @transform_0(%arg0: i32) -> (i32, i32) {
    %c0_i32 = arith.constant 0 : i32
    %c0_i32_0 = arith.constant 0 : i32
    return %arg0, %c0_i32 : i32, i32
  }
  func.func @transform_1(%arg0: i32) -> (i32, i32) {
    %c0_i32 = arith.constant 0 : i32
    %c0_i32_0 = arith.constant 0 : i32
    return %arg0, %c0_i32 : i32, i32
  }
}

</mosaic_0001>

<llo_original>
// kernel: tpu_custom_call.1
$region0: #{tpu_custom_call.1}
  #allocation0 [shape = 'u32[]', space=smem, size = 0x4, offset = 0x4, fixed_abs, tag = 'smem constant byte address 0x4 - core index']
  #allocation1 [shape = 'u32[144,128]{1,0:T(1,128)}', space=vmem, size = 0x12000, scoped, tag = 'internal scratch']
  %s0 = inlined_call_operand.hbm [shape: f32[32,128], index: 0, kind: input, shape index: {}]
  %s1 = inlined_call_operand.hbm [shape: f32[32,128], index: 1, kind: output, shape index: {}]
  %s2 = sld [smem:[#allocation0]]
  $region18: #{tpu_custom_call.1} parent=0
    _
  %s4 = ssub.s32 1, %s2
  %s5 = scalar_select 0, %s4, %s2
  $region1: #{tpu_custom_call.1} parent=0
    #allocation2 [shape = 'u8[16384]{0}', space=vmem, size = 0x4000, scoped, tag = 'input window, operand 0, single buffered']
    #allocation3 [shape = 's32[1]{0}', space=sflag, size = 0x4, scoped, tag = 'scoped memory for tpu_custom_call.1']
    #allocation4 [shape = 's32[1]{0}', space=sflag, size = 0x4, scoped, tag = 'scoped memory for tpu_custom_call.1']
    #allocation5 [shape = 'u8[16384]{0}', space=vmem, size = 0x4000, scoped, tag = 'output window, operand 0, single buffered']
    %6 = vsyncpa [#allocation3], 0
    %7 = vsyncpa [#allocation4], 0
    // Predicated region
    $region2: #{tpu_custom_call.1} parent=1 // pred_check
      _
    $region3: #{tpu_custom_call.1} parent=1 // pred_check_branch
      %9 = sbr.rel (0) target = $region5
    $region4: #{tpu_custom_call.1} parent=1 // pred_region
      %s11 = ssub.s32 512, 512
      %12 = vsyncadd [#allocation3], %s11
      %s13 = sshll.u32 [#allocation2], 4
      %s14 = int_to_ptr.vmem [resolvable:$true] %s13
      %19 = dma.hbm_to_vmem [thread:$0]  %s0, 512, %s14, [#allocation3], 128, 128, 8
    $region5: #{tpu_custom_call.1} parent=1 // pred_fallthru
      _
    // Predicated region
    $region6: #{tpu_custom_call.1} parent=1 // pred_check
      _
    $region7: #{tpu_custom_call.1} parent=1 // pred_check_branch
      %21 = sbr.rel (0) target = $region9
    $region8: #{tpu_custom_call.1} parent=1 // pred_region
      %22 = dma.done [#allocation3], 512
    $region9: #{tpu_custom_call.1} parent=1 // pred_fallthru
      _
    %v23 = vld [vmem:[#allocation2] sm:$0xff]
    %v24 = vld [vmem:[#allocation2 + $0x8] sm:$0xff]
    %v25 = vld [vmem:[#allocation2 + $0x10] sm:$0xff]
    %v26 = vld [vmem:[#allocation2 + $0x18] sm:$0xff]
    %v27 = vlaneseq
    %v28 = vand.u32 %v27, 127
    %v29 = vand.u32 %v28, 1
    %vm30 = vcmp.eq.s32.totalorder %v29, 0
    %31 = vrot.lane.b32.xlu0 %v23, 1
    %v32 = vpop.permute.xlu0 %31
    %33 = vrot.lane.b32.xlu0 %v24, 1
    %v34 = vpop.permute.xlu0 %33
    %35 = vrot.lane.b32.xlu0 %v25, 1
    %v36 = vpop.permute.xlu0 %35
    %37 = vrot.lane.b32.xlu0 %v26, 1
    %v38 = vpop.permute.xlu0 %37
    %39 = vrot.lane.b32.xlu0 %v23, 127
    %v40 = vpop.permute.xlu0 %39
    %41 = vrot.lane.b32.xlu0 %v24, 127
    %v42 = vpop.permute.xlu0 %41
    %43 = vrot.lane.b32.xlu0 %v25, 127
    %v44 = vpop.permute.xlu0 %43
    %45 = vrot.lane.b32.xlu0 %v26, 127
    %v46 = vpop.permute.xlu0 %45
    %v47 = vsel %vm30, %v23, %v32
    %v48 = vsel %vm30, %v24, %v34
    %v49 = vsel %vm30, %v25, %v36
    %v50 = vsel %vm30, %v26, %v38
    %v51 = vsel %vm30, %v40, %v23
    %v52 = vsel %vm30, %v42, %v24
    %v53 = vsel %vm30, %v44, %v25
    %v54 = vsel %vm30, %v46, %v26
    %vm55 = vcmp.ge.f32.partialorder %v47, 0.0
    %vm56 = vcmp.ge.f32.partialorder %v48, 0.0
    %vm57 = vcmp.ge.f32.partialorder %v49, 0.0
    %vm58 = vcmp.ge.f32.partialorder %v50, 0.0
    %vm59 = vcmp.ge.f32.partialorder %v51, 0.0
    %vm60 = vcmp.ge.f32.partialorder %v52, 0.0
    %vm61 = vcmp.ge.f32.partialorder %v53, 0.0
    %vm62 = vcmp.ge.f32.partialorder %v54, 0.0
    %vm63 = vmand %vm55, %vm59
    %vm64 = vmand %vm56, %vm60
    %vm65 = vmand %vm57, %vm61
    %vm66 = vmand %vm58, %vm62
    %v67 = vsel %vm63, %v23, 0.0
    %v68 = vsel %vm64, %v24, 0.0
    %v69 = vsel %vm65, %v25, 0.0
    %v70 = vsel %vm66, %v26, 0.0
    %71 = vst [vmem:[#allocation5] sm:$0xff] %v67
    %72 = vst [vmem:[#allocation5 + $0x8] sm:$0xff] %v68
    %73 = vst [vmem:[#allocation5 + $0x10] sm:$0xff] %v69
    %74 = vst [vmem:[#allocation5 + $0x18] sm:$0xff] %v70
    // Predicated region
    $region10: #{tpu_custom_call.1} parent=1 // pred_check
      _
    $region11: #{tpu_custom_call.1} parent=1 // pred_check_branch
      %76 = sbr.rel (0) target = $region13
    $region12: #{tpu_custom_call.1} parent=1 // pred_region
      %s78 = ssub.s32 512, 512
      %79 = vsyncadd [#allocation4], %s78
      %s80 = sshll.u32 [#allocation5], 4
      %s81 = int_to_ptr.vmem [resolvable:$true] %s80
      %86 = dma.vmem_to_hbm [thread:$0]  %s81, 512, %s1, [#allocation4], 128, 128, 8
    $region13: #{tpu_custom_call.1} parent=1 // pred_fallthru
      _
    // Predicated region
    $region14: #{tpu_custom_call.1} parent=1 // pred_check
      _
    $region15: #{tpu_custom_call.1} parent=1 // pred_check_branch
      %88 = sbr.rel (0) target = $region17
    $region16: #{tpu_custom_call.1} parent=1 // pred_region
      %89 = dma.done [#allocation4], 512
    $region17: #{tpu_custom_call.1} parent=1 // pred_fallthru
      _
    %90 = vsyncpa [#allocation3], 1
    %91 = vsyncpa [#allocation4], 1

</llo_original>
